<compile_context>
chip_gen: v7x
topology: tpu7x:2x2x1
jax: 0.10.0
libtpu: 0.0.40
codegen_flags: <defaults>
</compile_context>

<pallas_src>
import functools

import jax
import jax.numpy as jnp
from jax.experimental import pallas as pl
from jax.experimental.pallas import tpu as pltpu

LANE = 128          # vreg lane width
SUBLANE_BF16 = 16   # bf16 sublane packing -> batch tiles are multiples of 16


def _round_up(x, m):
    return ((x + m - 1) // m) * m


def _cdiv(a, b):
    return (a + b - 1) // b


def _pad_to(arr, shape):
    pads = [(0, t - s) for s, t in zip(arr.shape, shape)]
    return jnp.pad(arr, pads)


def qnet_kernel(x_ref, w1_ref, b1_ref, w2_ref, b2_ref, w3_ref, b3_ref, o_ref):
    """Fused 3-layer MLP on one (TB, S_p) batch tile.

    Matmul operands are bf16 (MXU-native on v5e/v6e/v7x); accumulation,
    bias-add and ReLU are f32; the output is written back in f32.
    """
    x = x_ref[...]                                                     # bf16
    h1 = jnp.dot(x, w1_ref[...], preferred_element_type=jnp.float32) + b1_ref[...]
    h1 = jnp.maximum(h1, 0.0).astype(jnp.bfloat16)
    h2 = jnp.dot(h1, w2_ref[...], preferred_element_type=jnp.float32) + b2_ref[...]
    h2 = jnp.maximum(h2, 0.0).astype(jnp.bfloat16)
    out = jnp.dot(h2, w3_ref[...], preferred_element_type=jnp.float32) + b3_ref[...]
    o_ref[...] = out.astype(o_ref.dtype)


def prepare_params(params):
    """Pad feature dims to multiples of 128 and cast weights to bf16, ONCE.

    nn.Linear computes x @ W.T + b; weights here are already stored as
    (in_features, out_features) so the kernel computes x @ W + b.
    """
    w1, b1, w2, b2, w3, b3 = params
    S, H = w1.shape
    A = w3.shape[1]
    S_p, H_p, A_p = (_round_up(d, LANE) for d in (S, H, A))
    # NOTE: on v6e/v7x the MXU is 256x256; if hidden_size were a free config
    # knob, rounding H_p to a multiple of 256 would keep the array full.
    w1_p = _pad_to(w1, (S_p, H_p)).astype(jnp.bfloat16)
    w2_p = _pad_to(w2, (H_p, H_p)).astype(jnp.bfloat16)
    w3_p = _pad_to(w3, (H_p, A_p)).astype(jnp.bfloat16)
    b1_p = _pad_to(b1.reshape(1, -1), (1, H_p)).astype(jnp.float32)
    b2_p = _pad_to(b2.reshape(1, -1), (1, H_p)).astype(jnp.float32)
    b3_p = _pad_to(b3.reshape(1, -1), (1, A_p)).astype(jnp.float32)
    return (w1_p, b1_p, w2_p, b2_p, w3_p, b3_p)


def _choose_batch_tile(B, batch_tile):
    """Tile the batch to minimize last-tile padding; >=2 steps when possible
    so the 'parallel' axis can shard across v7x's two TensorCores."""
    n_tiles = max(_cdiv(B, batch_tile), 1)
    if n_tiles == 1 and B > SUBLANE_BF16:
        n_tiles = 2
    TB = _round_up(_cdiv(B, n_tiles), SUBLANE_BF16)
    TB = min(TB, _round_up(batch_tile, SUBLANE_BF16))
    B_p = _round_up(B, TB)
    return TB, B_p


def _resident_spec(shape):
    """Constant index_map -> DMA'd once and VMEM-resident across grid steps;
    single-buffered (Buffered(1)) since it is never re-fetched."""
    idx = lambda i: (0,) * len(shape)
    try:
        return pl.BlockSpec(shape, idx, pipeline_mode=pl.Buffered(1))
    except TypeError:  # older BlockSpec signature without pipeline_mode
        return pl.BlockSpec(shape, idx)


@functools.partial(jax.jit, static_argnames=("action_size", "batch_tile"))
def qnet_forward(state, padded_params, *, action_size, batch_tile=1024):
    """state: (B, state_size) f32 -> (B, action_size) f32."""
    w1_p, b1_p, w2_p, b2_p, w3_p, b3_p = padded_params
    B, _ = state.shape
    S_p, H_p = w1_p.shape
    A_p = w3_p.shape[1]

    TB, B_p = _choose_batch_tile(B, batch_tile)

    # Only per-call prep: pad + cast the state; lane-dense (multiple-of-128)
    # feature dims keep every load/store unmasked.
    x_p = _pad_to(state.astype(jnp.bfloat16), (B_p, S_p))

    # VMEM budget: double-buffered x/out tiles + single-buffered bf16 weights
    # + f32 biases + activation headroom; cap at 64 MiB (v7x physical VMEM).
    bytes_weights = (S_p * H_p + H_p * H_p + H_p * A_p) * 2
    bytes_biases = (2 * H_p + A_p) * 4
    bytes_io = 2 * TB * S_p * 2 + 2 * TB * A_p * 4
    bytes_act = 4 * TB * H_p * 4
    vmem_est = 2 * (bytes_weights + bytes_biases + bytes_io + bytes_act)
    vmem_limit = int(min(64 << 20, max(vmem_est + (4 << 20), 16 << 20)))

    flops = 2 * B_p * (S_p * H_p + H_p * H_p + H_p * A_p)
    bytes_accessed = (B_p * S_p * 2 + B_p * A_p * 4
                      + bytes_weights + bytes_biases)
    cost = pl.CostEstimate(flops=flops, transcendentals=0,
                           bytes_accessed=bytes_accessed)

    out_p = pl.pallas_call(
        qnet_kernel,
        out_shape=jax.ShapeDtypeStruct((B_p, A_p), jnp.float32),
        grid_spec=pl.GridSpec(
            grid=(B_p // TB,),
            in_specs=[
                pl.BlockSpec((TB, S_p), lambda i: (i, 0)),      # state tile
                _resident_spec((S_p, H_p)), _resident_spec((1, H_p)),  # layer1
                _resident_spec((H_p, H_p)), _resident_spec((1, H_p)),  # layer2
                _resident_spec((H_p, A_p)), _resident_spec((1, A_p)),  # layer3
            ],
            out_specs=pl.BlockSpec((TB, A_p), lambda i: (i, 0)),
        ),
        compiler_params=pltpu.CompilerParams(
            dimension_semantics=("parallel",),
            vmem_limit_bytes=vmem_limit),
        cost_estimate=cost,
    )(x_p, w1_p, b1_p, w2_p, b2_p, w3_p, b3_p)

    # Slice off batch and lane padding.
    return out_p[:B, :action_size]


def init_params(key, state_size, action_size, hidden_size):
    """Deterministic init mimicking nn.Linear's uniform(-1/sqrt(in), 1/sqrt(in))."""
    keys = jax.random.split(key, 6)

    def linear(kw, kb, fan_in, fan_out):
        bound = 1.0 / jnp.sqrt(fan_in)
        w = jax.random.uniform(kw, (fan_in, fan_out), jnp.float32, -bound, bound)
        b = jax.random.uniform(kb, (1, fan_out), jnp.float32, -bound, bound)
        return w, b

    w1, b1 = linear(keys[0], keys[1], state_size, hidden_size)
    w2, b2 = linear(keys[2], keys[3], hidden_size, hidden_size)
    w3, b3 = linear(keys[4], keys[5], hidden_size, action_size)
    return (w1, b1, w2, b2, w3, b3)


if __name__ == "__main__":
    # CartPole-like sizes: state_size=4, action_size=2; small hidden + batch.
    state_size, action_size, hidden_size = 4, 2, 32
    batch = 8

    key = jax.random.PRNGKey(0)
    k_params, k_state = jax.random.split(key)
    params = init_params(k_params, state_size, action_size, hidden_size)
    state = jax.random.normal(k_state, (batch, state_size), jnp.float32)

    padded_params = prepare_params(params)   # pad + bf16-cast weights ONCE
    out = qnet_forward(state, padded_params, action_size=action_size)
    jax.block_until_ready(out)

    # Pure-JAX f32 reference (kernel matmuls are bf16 -> looser tolerance).
    w1, b1, w2, b2, w3, b3 = params
    ref = jnp.maximum(state @ w1 + b1, 0.0)
    ref = jnp.maximum(ref @ w2 + b2, 0.0)
    ref = ref @ w3 + b3
    assert out.shape == (batch, action_size)
    assert jnp.allclose(out, ref, atol=5e-2, rtol=5e-2), "mismatch vs reference"

    print("KERNEL_OK")
</pallas_src>

<mosaic_0001>
module attributes {stable_mosaic.version = 11 : i64} {
  func.func @qnet_kernel(%arg0: i32, %arg1: memref<16x128xbf16, #tpu.memory_space<vmem>>, %arg2: memref<128x128xbf16, #tpu.memory_space<vmem>>, %arg3: memref<1x128xf32, #tpu.memory_space<vmem>>, %arg4: memref<128x128xbf16, #tpu.memory_space<vmem>>, %arg5: memref<1x128xf32, #tpu.memory_space<vmem>>, %arg6: memref<128x128xbf16, #tpu.memory_space<vmem>>, %arg7: memref<1x128xf32, #tpu.memory_space<vmem>>, %arg8: memref<16x128xf32, #tpu.memory_space<vmem>>) attributes {dimension_semantics = [#tpu.dimension_semantics<parallel>], iteration_bounds = array<i64: 1>, scalar_prefetch = 0 : i64, scratch_operands = 0 : i64, tpu.core_type = #tpu.core_type<tc>, window_params = [{transform_indices = @transform_0, window_bounds = array<i64: 16, 128>}, {pipeline_mode = #tpu.pipeline_mode<synchronous>, transform_indices = @transform_1, window_bounds = array<i64: 128, 128>}, {pipeline_mode = #tpu.pipeline_mode<synchronous>, transform_indices = @transform_2, window_bounds = array<i64: 1, 128>}, {pipeline_mode = #tpu.pipeline_mode<synchronous>, transform_indices = @transform_3, window_bounds = array<i64: 128, 128>}, {pipeline_mode = #tpu.pipeline_mode<synchronous>, transform_indices = @transform_4, window_bounds = array<i64: 1, 128>}, {pipeline_mode = #tpu.pipeline_mode<synchronous>, transform_indices = @transform_5, window_bounds = array<i64: 128, 128>}, {pipeline_mode = #tpu.pipeline_mode<synchronous>, transform_indices = @transform_6, window_bounds = array<i64: 1, 128>}, {transform_indices = @transform_7, window_bounds = array<i64: 16, 128>}]} {
    %c0 = arith.constant 0 : index
    %c0_0 = arith.constant 0 : index
    %0 = vector.load %arg1[%c0, %c0_0] : memref<16x128xbf16, #tpu.memory_space<vmem>>, vector<16x128xbf16>
    %c0_1 = arith.constant 0 : index
    %c0_2 = arith.constant 0 : index
    %1 = vector.load %arg2[%c0_1, %c0_2] : memref<128x128xbf16, #tpu.memory_space<vmem>>, vector<128x128xbf16>
    %cst = arith.constant dense<0.000000e+00> : vector<16x128xf32>
    %2 = tpu.matmul %0, %1, %cst {dimension_numbers = #tpu.dot_dimension_numbers<[1], [0], [0], [1], [0, 0, 1, 1], [], []>} : vector<16x128xbf16>, vector<128x128xbf16>, vector<16x128xf32> -> vector<16x128xf32>
    %c0_3 = arith.constant 0 : index
    %c0_4 = arith.constant 0 : index
    %3 = vector.load %arg3[%c0_3, %c0_4] : memref<1x128xf32, #tpu.memory_space<vmem>>, vector<1x128xf32>
    %4 = vector.broadcast %3 : vector<1x128xf32> to vector<16x128xf32>
    %5 = arith.addf %2, %4 : vector<16x128xf32>
    %cst_5 = arith.constant 0.000000e+00 : f32
    %6 = vector.broadcast %cst_5 : f32 to vector<16x128xf32>
    %7 = arith.maximumf %5, %6 : vector<16x128xf32>
    %8 = arith.truncf %7 : vector<16x128xf32> to vector<16x128xbf16>
    %c0_6 = arith.constant 0 : index
    %c0_7 = arith.constant 0 : index
    %9 = vector.load %arg4[%c0_6, %c0_7] : memref<128x128xbf16, #tpu.memory_space<vmem>>, vector<128x128xbf16>
    %cst_8 = arith.constant dense<0.000000e+00> : vector<16x128xf32>
    %10 = tpu.matmul %8, %9, %cst_8 {dimension_numbers = #tpu.dot_dimension_numbers<[1], [0], [0], [1], [0, 0, 1, 1], [], []>} : vector<16x128xbf16>, vector<128x128xbf16>, vector<16x128xf32> -> vector<16x128xf32>
    %c0_9 = arith.constant 0 : index
    %c0_10 = arith.constant 0 : index
    %11 = vector.load %arg5[%c0_9, %c0_10] : memref<1x128xf32, #tpu.memory_space<vmem>>, vector<1x128xf32>
    %12 = vector.broadcast %11 : vector<1x128xf32> to vector<16x128xf32>
    %13 = arith.addf %10, %12 : vector<16x128xf32>
    %cst_11 = arith.constant 0.000000e+00 : f32
    %14 = vector.broadcast %cst_11 : f32 to vector<16x128xf32>
    %15 = arith.maximumf %13, %14 : vector<16x128xf32>
    %16 = arith.truncf %15 : vector<16x128xf32> to vector<16x128xbf16>
    %c0_12 = arith.constant 0 : index
    %c0_13 = arith.constant 0 : index
    %17 = vector.load %arg6[%c0_12, %c0_13] : memref<128x128xbf16, #tpu.memory_space<vmem>>, vector<128x128xbf16>
    %cst_14 = arith.constant dense<0.000000e+00> : vector<16x128xf32>
    %18 = tpu.matmul %16, %17, %cst_14 {dimension_numbers = #tpu.dot_dimension_numbers<[1], [0], [0], [1], [0, 0, 1, 1], [], []>} : vector<16x128xbf16>, vector<128x128xbf16>, vector<16x128xf32> -> vector<16x128xf32>
    %c0_15 = arith.constant 0 : index
    %c0_16 = arith.constant 0 : index
    %19 = vector.load %arg7[%c0_15, %c0_16] : memref<1x128xf32, #tpu.memory_space<vmem>>, vector<1x128xf32>
    %20 = vector.broadcast %19 : vector<1x128xf32> to vector<16x128xf32>
    %21 = arith.addf %18, %20 : vector<16x128xf32>
    %c0_17 = arith.constant 0 : index
    %c0_18 = arith.constant 0 : index
    %22 = vector.load %arg8[%c0_17, %c0_18] : memref<16x128xf32, #tpu.memory_space<vmem>>, vector<16x128xf32>
    tpu.vector_store %arg8[%c0_17, %c0_18], %21 {strides = array<i32>} : memref<16x128xf32, #tpu.memory_space<vmem>>, vector<16x128xf32>,
    return
  }
  func.func @transform_0(%arg0: i32) -> (i32, i32) {
    %c0_i32 = arith.constant 0 : i32
    %c0_i32_0 = arith.constant 0 : i32
    return %arg0, %c0_i32 : i32, i32
  }
  func.func @transform_1(%arg0: i32) -> (i32, i32) {
    %c0_i32 = arith.constant 0 : i32
    %c0_i32_0 = arith.constant 0 : i32
    %c0_i32_1 = arith.constant 0 : i32
    return %c0_i32, %c0_i32_0 : i32, i32
  }
  func.func @transform_2(%arg0: i32) -> (i32, i32) {
    %c0_i32 = arith.constant 0 : i32
    %c0_i32_0 = arith.constant 0 : i32
    %c0_i32_1 = arith.constant 0 : i32
    return %c0_i32, %c0_i32_0 : i32, i32
  }
  func.func @transform_3(%arg0: i32) -> (i32, i32) {
    %c0_i32 = arith.constant 0 : i32
    %c0_i32_0 = arith.constant 0 : i32
    %c0_i32_1 = arith.constant 0 : i32
    return %c0_i32, %c0_i32_0 : i32, i32
  }
  func.func @transform_4(%arg0: i32) -> (i32, i32) {
    %c0_i32 = arith.constant 0 : i32
    %c0_i32_0 = arith.constant 0 : i32
    %c0_i32_1 = arith.constant 0 : i32
    return %c0_i32, %c0_i32_0 : i32, i32
  }
  func.func @transform_5(%arg0: i32) -> (i32, i32) {
    %c0_i32 = arith.constant 0 : i32
    %c0_i32_0 = arith.constant 0 : i32
    %c0_i32_1 = arith.constant 0 : i32
    return %c0_i32, %c0_i32_0 : i32, i32
  }
  func.func @transform_6(%arg0: i32) -> (i32, i32) {
    %c0_i32 = arith.constant 0 : i32
    %c0_i32_0 = arith.constant 0 : i32
    %c0_i32_1 = arith.constant 0 : i32
    return %c0_i32, %c0_i32_0 : i32, i32
  }
  func.func @transform_7(%arg0: i32) -> (i32, i32) {
    %c0_i32 = arith.constant 0 : i32
    %c0_i32_0 = arith.constant 0 : i32
    return %arg0, %c0_i32 : i32, i32
  }
}

</mosaic_0001>

<llo_original>
// kernel: qnet_forward.1
$region0: #{qnet_forward.1}
  #allocation0 [shape = 'u32[]', space=smem, size = 0x4, offset = 0x4, fixed_abs, tag = 'smem constant byte address 0x4 - core index']
  #allocation1 [shape = 'u32[144,128]{1,0:T(1,128)}', space=vmem, size = 0x12000, scoped, tag = 'internal scratch']
  %s0 = inlined_call_operand.vmem [shape: bf16[16,128], index: 0, kind: input, shape index: {}]
  %s1 = inlined_call_operand.hbm [shape: bf16[128,128], index: 1, kind: input, shape index: {}]
  %s2 = inlined_call_operand.vmem [shape: f32[1,128], index: 2, kind: input, shape index: {}]
  %s3 = inlined_call_operand.hbm [shape: bf16[128,128], index: 3, kind: input, shape index: {}]
  %s4 = inlined_call_operand.vmem [shape: f32[1,128], index: 4, kind: input, shape index: {}]
  %s5 = inlined_call_operand.hbm [shape: bf16[128,128], index: 5, kind: input, shape index: {}]
  %s6 = inlined_call_operand.vmem [shape: f32[1,128], index: 6, kind: input, shape index: {}]
  %s7 = inlined_call_operand.vmem [shape: f32[16,128], index: 7, kind: output, shape index: {}]
  %s8 = sld [smem:[#allocation0]]
  $region50: #{qnet_forward.1} parent=0
    _
  %s10 = ssub.s32 1, %s8
  %s11 = scalar_select 0, %s10, %s8
  $region1: #{qnet_forward.1} parent=0
    #allocation2 [shape = 'u8[32768]{0}', space=vmem, size = 0x8000, scoped, tag = 'input window, operand 1, single buffered']
    #allocation3 [shape = 's32[1]{0}', space=sflag, size = 0x4, scoped, tag = 'scoped memory for qnet_forward.1']
    #allocation4 [shape = 'u8[32768]{0}', space=vmem, size = 0x8000, scoped, tag = 'input window, operand 3, single buffered']
    #allocation5 [shape = 's32[1]{0}', space=sflag, size = 0x4, scoped, tag = 'scoped memory for qnet_forward.1']
    #allocation6 [shape = 'u8[32768]{0}', space=vmem, size = 0x8000, scoped, tag = 'input window, operand 5, single buffered']
    %12 = vsyncpa [#allocation3], 0
    %13 = vsyncpa [#allocation5], 0
    // Predicated region
    $region2: #{qnet_forward.1} parent=1 // pred_check
      _
    $region3: #{qnet_forward.1} parent=1 // pred_check_branch
      %15 = sbr.rel (0) target = $region5
    $region4: #{qnet_forward.1} parent=1 // pred_region
      _
    $region5: #{qnet_forward.1} parent=1 // pred_fallthru
      _
    // Predicated region
    $region6: #{qnet_forward.1} parent=1 // pred_check
      _
    $region7: #{qnet_forward.1} parent=1 // pred_check_branch
      %17 = sbr.rel (0) target = $region9
    $region8: #{qnet_forward.1} parent=1 // pred_region
      %s19 = ssub.s32 1024, 1024
      %20 = vsyncadd [#allocation3], %s19
      %s21 = sshll.u32 [#allocation2], 4
      %s22 = int_to_ptr.vmem [resolvable:$true] %s21
      %27 = dma.hbm_to_vmem [thread:$0]  %s1, 1024, %s22, [#allocation3], 64, 64, 4
    $region9: #{qnet_forward.1} parent=1 // pred_fallthru
      _
    // Predicated region
    $region10: #{qnet_forward.1} parent=1 // pred_check
      _
    $region11: #{qnet_forward.1} parent=1 // pred_check_branch
      %29 = sbr.rel (0) target = $region13
    $region12: #{qnet_forward.1} parent=1 // pred_region
      _
    $region13: #{qnet_forward.1} parent=1 // pred_fallthru
      _
    // Predicated region
    $region14: #{qnet_forward.1} parent=1 // pred_check
      _
    $region15: #{qnet_forward.1} parent=1 // pred_check_branch
      %31 = sbr.rel (0) target = $region17
    $region16: #{qnet_forward.1} parent=1 // pred_region
      %s33 = ssub.s32 1024, 1024
      %34 = vsyncadd [#allocation5], %s33
      %s35 = sshll.u32 [#allocation4], 4
      %s36 = int_to_ptr.vmem [resolvable:$true] %s35
      %41 = dma.hbm_to_vmem [thread:$0]  %s3, 1024, %s36, [#allocation5], 64, 64, 4
    $region17: #{qnet_forward.1} parent=1 // pred_fallthru
      _
    // Predicated region
    $region18: #{qnet_forward.1} parent=1 // pred_check
      _
    $region19: #{qnet_forward.1} parent=1 // pred_check_branch
      %43 = sbr.rel (0) target = $region21
    $region20: #{qnet_forward.1} parent=1 // pred_region
      _
    $region21: #{qnet_forward.1} parent=1 // pred_fallthru
      _
    // Predicated region
    $region22: #{qnet_forward.1} parent=1 // pred_check
      _
    $region23: #{qnet_forward.1} parent=1 // pred_check_branch
      %45 = sbr.rel (0) target = $region25
    $region24: #{qnet_forward.1} parent=1 // pred_region
      %s47 = ssub.s32 1024, 1024
      %48 = vsyncadd [#allocation5], %s47
      %s49 = sshll.u32 [#allocation6], 4
      %s50 = int_to_ptr.vmem [resolvable:$true] %s49
      %55 = dma.hbm_to_vmem [thread:$0]  %s5, 1024, %s50, [#allocation5], 64, 64, 4
    $region25: #{qnet_forward.1} parent=1 // pred_fallthru
      _
    // Predicated region
    $region26: #{qnet_forward.1} parent=1 // pred_check
      _
    $region27: #{qnet_forward.1} parent=1 // pred_check_branch
      %57 = sbr.rel (0) target = $region29
    $region28: #{qnet_forward.1} parent=1 // pred_region
      _
    $region29: #{qnet_forward.1} parent=1 // pred_fallthru
      _
    // Predicated region
    $region30: #{qnet_forward.1} parent=1 // pred_check
      _
    $region31: #{qnet_forward.1} parent=1 // pred_check_branch
      %59 = sbr.rel (0) target = $region33
    $region32: #{qnet_forward.1} parent=1 // pred_region
      %60 = dma.done [#allocation3], 1024
    $region33: #{qnet_forward.1} parent=1 // pred_fallthru
      _
    // Predicated region
    $region34: #{qnet_forward.1} parent=1 // pred_check
      _
    $region35: #{qnet_forward.1} parent=1 // pred_check_branch
      %62 = sbr.rel (0) target = $region37
    $region36: #{qnet_forward.1} parent=1 // pred_region
      %63 = dma.done [#allocation5], 1024
    $region37: #{qnet_forward.1} parent=1 // pred_fallthru
      _
    // Predicated region
    $region38: #{qnet_forward.1} parent=1 // pred_check
      _
    $region39: #{qnet_forward.1} parent=1 // pred_check_branch
      %65 = sbr.rel (0) target = $region41
    $region40: #{qnet_forward.1} parent=1 // pred_region
      %66 = dma.done [#allocation5], 1024
    $region41: #{qnet_forward.1} parent=1 // pred_fallthru
      _
    %v68 = vld [vmem:[%s0] sm:$0xf]
    %v69 = vld [vmem:[%s0 + $0x4] sm:$0xf]
    %v70 = vld [vmem:[#allocation2] sm:$0xf]
    %v71 = vld [vmem:[#allocation2 + $0x4] sm:$0xf]
    %v72 = vld [vmem:[#allocation2 + $0x8] sm:$0xf]
    %v73 = vld [vmem:[#allocation2 + $0xc] sm:$0xf]
    %v74 = vld [vmem:[#allocation2 + $0x10] sm:$0xf]
    %v75 = vld [vmem:[#allocation2 + $0x14] sm:$0xf]
    %v76 = vld [vmem:[#allocation2 + $0x18] sm:$0xf]
    %v77 = vld [vmem:[#allocation2 + $0x1c] sm:$0xf]
    %v78 = vld [vmem:[#allocation2 + $0x20] sm:$0xf]
    %v79 = vld [vmem:[#allocation2 + $0x24] sm:$0xf]
    %v80 = vld [vmem:[#allocation2 + $0x28] sm:$0xf]
    %v81 = vld [vmem:[#allocation2 + $0x2c] sm:$0xf]
    %v82 = vld [vmem:[#allocation2 + $0x30] sm:$0xf]
    %v83 = vld [vmem:[#allocation2 + $0x34] sm:$0xf]
    %v84 = vld [vmem:[#allocation2 + $0x38] sm:$0xf]
    %v85 = vld [vmem:[#allocation2 + $0x3c] sm:$0xf]
    %v86 = vld [vmem:[%s2] sm:$0x1]
    %v88 = vlaneseq
    %v89 = vshrl.u32 %v88, 7
    %v90 = vsub.s32 0, %v89
    %v91 = vrot.slane %v86, %v90
    %v95 = vunpack.c.l.b16 %v68
    %v96 = vunpack.c.l.b16 %v69
    %v97 = vpack.c.b16 %v96, %v95
    %v115 = vunpack.c.l.b16 %v70
    %v116 = vunpack.c.l.b16 %v71
    %v117 = vunpack.c.l.b16 %v72
    %v118 = vunpack.c.l.b16 %v73
    %v119 = vunpack.c.l.b16 %v74
    %v120 = vunpack.c.l.b16 %v75
    %v121 = vunpack.c.l.b16 %v76
    %v122 = vunpack.c.l.b16 %v77
    %v123 = vunpack.c.l.b16 %v78
    %v124 = vunpack.c.l.b16 %v79
    %v125 = vunpack.c.l.b16 %v80
    %v126 = vunpack.c.l.b16 %v81
    %v127 = vunpack.c.l.b16 %v82
    %v128 = vunpack.c.l.b16 %v83
    %v129 = vunpack.c.l.b16 %v84
    %v130 = vunpack.c.l.b16 %v85
    %v131 = vpack.c.b16 %v116, %v115
    %v132 = vpack.c.b16 %v118, %v117
    %v133 = vpack.c.b16 %v120, %v119
    %v134 = vpack.c.b16 %v122, %v121
    %v135 = vpack.c.b16 %v124, %v123
    %v136 = vpack.c.b16 %v126, %v125
    %v137 = vpack.c.b16 %v128, %v127
    %v138 = vpack.c.b16 %v130, %v129
    %147 = vmatprep.subr.bf16.mxu0 0
    %148 = vmatpush1.bf16.msra.mxu0 %v131
    %149 = vmatprep.subr.bf16.mxu0 0
    %150 = vmatpush1.bf16.msra.mxu0 %v132
    %151 = vmatprep.subr.bf16.mxu0 0
    %152 = vmatpush1.bf16.msra.mxu0 %v133
    %153 = vmatprep.subr.bf16.mxu0 0
    %154 = vmatpush1.bf16.msra.mxu0 %v134
    %155 = vmatprep.subr.bf16.mxu0 0
    %156 = vmatpush1.bf16.msra.mxu0 %v135
    %157 = vmatprep.subr.bf16.mxu0 0
    %158 = vmatpush1.bf16.msra.mxu0 %v136
    %159 = vmatprep.subr.bf16.mxu0 0
    %160 = vmatpush1.bf16.msra.mxu0 %v137
    %161 = vmatprep.subr.bf16.mxu0 0
    %162 = vmatpush1.bf16.msra.mxu0 %v138
    %163 = vmatprep.subr.bf16.mxu0 0
    %164 = vmatpush1.bf16.msra.mxu0 0
    %165 = vmatprep.subr.bf16.mxu0 0
    %166 = vmatpush1.bf16.msra.mxu0 0
    %167 = vmatprep.subr.bf16.mxu0 0
    %168 = vmatpush1.bf16.msra.mxu0 0
    %169 = vmatprep.subr.bf16.mxu0 0
    %170 = vmatpush1.bf16.msra.mxu0 0
    %171 = vmatprep.subr.bf16.mxu0 0
    %172 = vmatpush1.bf16.msra.mxu0 0
    %173 = vmatprep.subr.bf16.mxu0 0
    %174 = vmatpush1.bf16.msra.mxu0 0
    %175 = vmatprep.subr.bf16.mxu0 0
    %176 = vmatpush1.bf16.msra.mxu0 0
    %177 = vmatprep.subr.bf16.mxu0 0
    %178 = vmatpush1.bf16.msra.mxu0 0
    %179 = vmatprep.mubr.bf16.mxu0 0
    %180 = vmatmul.mubr.bf16.gmra.mrb[0].mxu0 %v97
    %v181 = vpop.f32.mrb[0].mxu0
    %v182 = vadd.f32 %v91, %v181
    %v183 = vpop.f32.mrb[0].mxu0
    %v184 = vpop.f32.mrb[0].mxu0
    %v185 = vadd.f32 %v91, %v184
    %v186 = vpop.f32.mrb[0].mxu0
    %187 = vdwg.mxu0
    %v188 = vmax.f32 %v182, 0.0
    %v189 = vmax.f32 %v185, 0.0
    %v190 = vpack.c.bf16 %v189, %v188
    %v191 = vld [vmem:[#allocation4] sm:$0xf]
    %v192 = vld [vmem:[#allocation4 + $0x4] sm:$0xf]
    %v193 = vld [vmem:[#allocation4 + $0x8] sm:$0xf]
    %v194 = vld [vmem:[#allocation4 + $0xc] sm:$0xf]
    %v195 = vld [vmem:[#allocation4 + $0x10] sm:$0xf]
    %v196 = vld [vmem:[#allocation4 + $0x14] sm:$0xf]
    %v197 = vld [vmem:[#allocation4 + $0x18] sm:$0xf]
    %v198 = vld [vmem:[#allocation4 + $0x1c] sm:$0xf]
    %v199 = vld [vmem:[#allocation4 + $0x20] sm:$0xf]
    %v200 = vld [vmem:[#allocation4 + $0x24] sm:$0xf]
    %v201 = vld [vmem:[#allocation4 + $0x28] sm:$0xf]
    %v202 = vld [vmem:[#allocation4 + $0x2c] sm:$0xf]
    %v203 = vld [vmem:[#allocation4 + $0x30] sm:$0xf]
    %v204 = vld [vmem:[#allocation4 + $0x34] sm:$0xf]
    %v205 = vld [vmem:[#allocation4 + $0x38] sm:$0xf]
    %v206 = vld [vmem:[#allocation4 + $0x3c] sm:$0xf]
    %v207 = vld [vmem:[%s4] sm:$0x1]
    %v209 = vlaneseq
    %v210 = vshrl.u32 %v209, 7
    %v211 = vsub.s32 0, %v210
    %v212 = vrot.slane %v207, %v211
    %v230 = vunpack.c.l.b16 %v191
    %v231 = vunpack.c.l.b16 %v192
    %v232 = vunpack.c.l.b16 %v193
    %v233 = vunpack.c.l.b16 %v194
    %v234 = vunpack.c.l.b16 %v195
    %v235 = vunpack.c.l.b16 %v196
    %v236 = vunpack.c.l.b16 %v197
    %v237 = vunpack.c.l.b16 %v198
    %v238 = vunpack.c.l.b16 %v199
    %v239 = vunpack.c.l.b16 %v200
    %v240 = vunpack.c.l.b16 %v201
    %v241 = vunpack.c.l.b16 %v202
    %v242 = vunpack.c.l.b16 %v203
    %v243 = vunpack.c.l.b16 %v204
    %v244 = vunpack.c.l.b16 %v205
    %v245 = vunpack.c.l.b16 %v206
    %v246 = vpack.c.b16 %v231, %v230
    %v247 = vpack.c.b16 %v233, %v232
    %v248 = vpack.c.b16 %v235, %v234
    %v249 = vpack.c.b16 %v237, %v236
    %v250 = vpack.c.b16 %v239, %v238
    %v251 = vpack.c.b16 %v241, %v240
    %v252 = vpack.c.b16 %v243, %v242
    %v253 = vpack.c.b16 %v245, %v244
    %262 = vmatprep.subr.bf16.mxu0 0
    %263 = vmatpush1.bf16.msra.mxu0 %v246
    %264 = vmatprep.subr.bf16.mxu0 0
    %265 = vmatpush1.bf16.msra.mxu0 %v247
    %266 = vmatprep.subr.bf16.mxu0 0
    %267 = vmatpush1.bf16.msra.mxu0 %v248
    %268 = vmatprep.subr.bf16.mxu0 0
    %269 = vmatpush1.bf16.msra.mxu0 %v249
    %270 = vmatprep.subr.bf16.mxu0 0
    %271 = vmatpush1.bf16.msra.mxu0 %v250
    %272 = vmatprep.subr.bf16.mxu0 0
    %273 = vmatpush1.bf16.msra.mxu0 %v251
    %274 = vmatprep.subr.bf16.mxu0 0
    %275 = vmatpush1.bf16.msra.mxu0 %v252
    %276 = vmatprep.subr.bf16.mxu0 0
    %277 = vmatpush1.bf16.msra.mxu0 %v253
    %278 = vmatprep.subr.bf16.mxu0 0
    %279 = vmatpush1.bf16.msra.mxu0 0
    %280 = vmatprep.subr.bf16.mxu0 0
    %281 = vmatpush1.bf16.msra.mxu0 0
    %282 = vmatprep.subr.bf16.mxu0 0
    %283 = vmatpush1.bf16.msra.mxu0 0
    %284 = vmatprep.subr.bf16.mxu0 0
    %285 = vmatpush1.bf16.msra.mxu0 0
    %286 = vmatprep.subr.bf16.mxu0 0
    %287 = vmatpush1.bf16.msra.mxu0 0
    %288 = vmatprep.subr.bf16.mxu0 0
    %289 = vmatpush1.bf16.msra.mxu0 0
    %290 = vmatprep.subr.bf16.mxu0 0
    %291 = vmatpush1.bf16.msra.mxu0 0
    %292 = vmatprep.subr.bf16.mxu0 0
    %293 = vmatpush1.bf16.msra.mxu0 0
    %294 = vmatprep.mubr.bf16.mxu0 0
    %295 = vmatmul.mubr.bf16.gmra.mrb[0].mxu0 %v190
    %v296 = vpop.f32.mrb[0].mxu0
    %v297 = vadd.f32 %v212, %v296
    %v298 = vpop.f32.mrb[0].mxu0
    %v299 = vpop.f32.mrb[0].mxu0
    %v300 = vadd.f32 %v212, %v299
    %v301 = vpop.f32.mrb[0].mxu0
    %302 = vdwg.mxu0
    %v303 = vmax.f32 %v297, 0.0
    %v304 = vmax.f32 %v300, 0.0
    %v305 = vpack.c.bf16 %v304, %v303
    %v306 = vld [vmem:[#allocation6] sm:$0xf]
    %v307 = vld [vmem:[#allocation6 + $0x4] sm:$0xf]
    %v308 = vld [vmem:[#allocation6 + $0x8] sm:$0xf]
    %v309 = vld [vmem:[#allocation6 + $0xc] sm:$0xf]
    %v310 = vld [vmem:[#allocation6 + $0x10] sm:$0xf]
    %v311 = vld [vmem:[#allocation6 + $0x14] sm:$0xf]
    %v312 = vld [vmem:[#allocation6 + $0x18] sm:$0xf]
    %v313 = vld [vmem:[#allocation6 + $0x1c] sm:$0xf]
    %v314 = vld [vmem:[#allocation6 + $0x20] sm:$0xf]
    %v315 = vld [vmem:[#allocation6 + $0x24] sm:$0xf]
    %v316 = vld [vmem:[#allocation6 + $0x28] sm:$0xf]
    %v317 = vld [vmem:[#allocation6 + $0x2c] sm:$0xf]
    %v318 = vld [vmem:[#allocation6 + $0x30] sm:$0xf]
    %v319 = vld [vmem:[#allocation6 + $0x34] sm:$0xf]
    %v320 = vld [vmem:[#allocation6 + $0x38] sm:$0xf]
    %v321 = vld [vmem:[#allocation6 + $0x3c] sm:$0xf]
    %v322 = vld [vmem:[%s6] sm:$0x1]
    %v324 = vlaneseq
    %v325 = vshrl.u32 %v324, 7
    %v326 = vsub.s32 0, %v325
    %v327 = vrot.slane %v322, %v326
    %v345 = vunpack.c.l.b16 %v306
    %v346 = vunpack.c.l.b16 %v307
    %v347 = vunpack.c.l.b16 %v308
    %v348 = vunpack.c.l.b16 %v309
    %v349 = vunpack.c.l.b16 %v310
    %v350 = vunpack.c.l.b16 %v311
    %v351 = vunpack.c.l.b16 %v312
    %v352 = vunpack.c.l.b16 %v313
    %v353 = vunpack.c.l.b16 %v314
    %v354 = vunpack.c.l.b16 %v315
    %v355 = vunpack.c.l.b16 %v316
    %v356 = vunpack.c.l.b16 %v317
    %v357 = vunpack.c.l.b16 %v318
    %v358 = vunpack.c.l.b16 %v319
    %v359 = vunpack.c.l.b16 %v320
    %v360 = vunpack.c.l.b16 %v321
    %v361 = vpack.c.b16 %v346, %v345
    %v362 = vpack.c.b16 %v348, %v347
    %v363 = vpack.c.b16 %v350, %v349
    %v364 = vpack.c.b16 %v352, %v351
    %v365 = vpack.c.b16 %v354, %v353
    %v366 = vpack.c.b16 %v356, %v355
    %v367 = vpack.c.b16 %v358, %v357
    %v368 = vpack.c.b16 %v360, %v359
    %377 = vmatprep.subr.bf16.mxu0 0
    %378 = vmatpush1.bf16.msra.mxu0 %v361
    %379 = vmatprep.subr.bf16.mxu0 0
    %380 = vmatpush1.bf16.msra.mxu0 %v362
    %381 = vmatprep.subr.bf16.mxu0 0
    %382 = vmatpush1.bf16.msra.mxu0 %v363
    %383 = vmatprep.subr.bf16.mxu0 0
    %384 = vmatpush1.bf16.msra.mxu0 %v364
    %385 = vmatprep.subr.bf16.mxu0 0
    %386 = vmatpush1.bf16.msra.mxu0 %v365
    %387 = vmatprep.subr.bf16.mxu0 0
    %388 = vmatpush1.bf16.msra.mxu0 %v366
    %389 = vmatprep.subr.bf16.mxu0 0
    %390 = vmatpush1.bf16.msra.mxu0 %v367
    %391 = vmatprep.subr.bf16.mxu0 0
    %392 = vmatpush1.bf16.msra.mxu0 %v368
    %393 = vmatprep.subr.bf16.mxu0 0
    %394 = vmatpush1.bf16.msra.mxu0 0
    %395 = vmatprep.subr.bf16.mxu0 0
    %396 = vmatpush1.bf16.msra.mxu0 0
    %397 = vmatprep.subr.bf16.mxu0 0
    %398 = vmatpush1.bf16.msra.mxu0 0
    %399 = vmatprep.subr.bf16.mxu0 0
    %400 = vmatpush1.bf16.msra.mxu0 0
    %401 = vmatprep.subr.bf16.mxu0 0
    %402 = vmatpush1.bf16.msra.mxu0 0
    %403 = vmatprep.subr.bf16.mxu0 0
    %404 = vmatpush1.bf16.msra.mxu0 0
    %405 = vmatprep.subr.bf16.mxu0 0
    %406 = vmatpush1.bf16.msra.mxu0 0
    %407 = vmatprep.subr.bf16.mxu0 0
    %408 = vmatpush1.bf16.msra.mxu0 0
    %409 = vmatprep.mubr.bf16.mxu0 0
    %410 = vmatmul.mubr.bf16.gmra.mrb[0].mxu0 %v305
    %v411 = vpop.f32.mrb[0].mxu0
    %v412 = vadd.f32 %v327, %v411
    %v413 = vpop.f32.mrb[0].mxu0
    %v414 = vpop.f32.mrb[0].mxu0
    %v415 = vadd.f32 %v327, %v414
    %v416 = vpop.f32.mrb[0].mxu0
    %417 = vdwg.mxu0
    %418 = vst [vmem:[%s7] sm:$0xff] %v412
    %419 = vst [vmem:[%s7 + $0x8] sm:$0xff] %v415
    // Predicated region
    $region42: #{qnet_forward.1} parent=1 // pred_check
      _
    $region43: #{qnet_forward.1} parent=1 // pred_check_branch
      %421 = sbr.rel (0) target = $region45
    $region44: #{qnet_forward.1} parent=1 // pred_region
      _
    $region45: #{qnet_forward.1} parent=1 // pred_fallthru
      _
    // Predicated region
    $region46: #{qnet_forward.1} parent=1 // pred_check
      _
    $region47: #{qnet_forward.1} parent=1 // pred_check_branch
      %423 = sbr.rel (0) target = $region49
    $region48: #{qnet_forward.1} parent=1 // pred_region
      _
    $region49: #{qnet_forward.1} parent=1 // pred_fallthru
      _
    %424 = vsyncpa [#allocation3], 1
    %425 = vsyncpa [#allocation5], 1

</llo_original>
